<compile_context>
chip_gen: v7x
topology: tpu7x:2x2x1
jax: 0.10.0
libtpu: 0.0.40
codegen_flags: <defaults>
</compile_context>

<pallas_src>
import math
from functools import lru_cache, partial

import jax
import jax.numpy as jnp
from jax.experimental import pallas as pl
from jax.experimental.pallas import tpu as pltpu


_MiB = 1024 * 1024
_CHUNK_ROWS = 256        # in-kernel compute sub-chunk; bounds live f32 temporaries
_MAX_BLOCK_ROWS = 1024   # per-grid-step HBM block row cap (~>=85% of HBM roofline)


@lru_cache(maxsize=1)
def _chip_profile():
    """Returns (tile_budget_bytes, vmem_limit_bytes, num_tensorcores, has_bf16_vpu)."""
    kind = ""
    try:
        kind = jax.devices()[0].device_kind.lower()
    except Exception:
        pass
    vmem = None
    try:
        info = pltpu.get_tpu_info()
        v = int(getattr(info, "vmem_capacity_bytes", 0) or 0)
        if v > 0:
            vmem = v
    except Exception:
        pass
    is_v7 = ("v7" in kind) or ("7x" in kind)
    is_v5 = "v5" in kind
    if vmem is None:
        # Conservative default (v7x-sized VMEM) when the query is unavailable.
        vmem = 64 * _MiB if (is_v7 or not kind) else 128 * _MiB
    num_tc = 2 if (is_v7 or vmem <= 64 * _MiB) else 1
    has_bf16_vpu = not is_v5              # v5e VPU has no bf16; v6e / v7x do
    if vmem >= 96 * _MiB:                 # v5e / v6e: 128 MiB VMEM per TensorCore
        tile_budget = 88 * _MiB
    else:                                 # v7x: 64 MiB per TensorCore
        tile_budget = 44 * _MiB
    vmem_limit = int(min(tile_budget + 12 * _MiB, vmem - 8 * _MiB))
    return tile_budget, vmem_limit, num_tc, has_bf16_vpu


def _rmsnorm_kernel(x_ref, scale_ref, o_ref, *, eps, chunk_rows, mode):
    # x_ref: (tm, D) input tile, scale_ref: (1, D), o_ref: (tm, D).
    tm = x_ref.shape[0]

    def process(start, size):
        x = x_ref[pl.ds(start, size), :].astype(jnp.float32)      # x.to(float32)
        variance = jnp.mean(x * x, axis=-1, keepdims=True)        # mean(x**2, -1)
        x_norm = x * jax.lax.rsqrt(variance + eps)                # x * rsqrt(var+eps)
        if mode == "f32":
            # f32 input: x_norm already *is* x.to(input_dtype); skip the round-trip.
            out = (scale_ref[...] * x_norm).astype(o_ref.dtype)
        elif mode == "bf16_fast":
            # Packed low-precision multiply (scale pre-cast once in the wrapper).
            out = scale_ref[...] * x_norm.astype(o_ref.dtype)
        else:  # "roundtrip": explicit f32 math (v5e VPU has no bf16)
            out = (scale_ref[...]
                   * x_norm.astype(o_ref.dtype).astype(jnp.float32)).astype(o_ref.dtype)
        o_ref[pl.ds(start, size), :] = out

    n_full = tm // chunk_rows
    rem = tm - n_full * chunk_rows
    if n_full == 1 and rem == 0:
        process(0, tm)
    else:
        # fori_loop (not a static Python loop) so the f32 temporaries of one
        # chunk are not kept live across chunks.
        def body(c, carry):
            process(pl.multiple_of(c * chunk_rows, chunk_rows), chunk_rows)
            return carry

        jax.lax.fori_loop(0, n_full, body, 0, unroll=(n_full <= 8))
        if rem > 0:
            process(n_full * chunk_rows, rem)   # static-size tail chunk


def _round_up(x, m):
    return ((x + m - 1) // m) * m


def _pick_tile(rows, dim, in_item, out_item, tile_budget, num_tc):
    """Choose (block_rows, chunk_rows) for a (rows, dim) slab."""
    sub = {1: 32, 2: 16, 4: 8}.get(in_item, 8)   # sublane multiple for the dtype
    if rows <= sub:
        return rows, rows                        # full-extent block is always legal

    io_per_row = dim * 2 * (in_item + out_item)  # double-buffered in + out HBM blocks
    # f32 temporaries are bounded to one _CHUNK_ROWS compute chunk (<= 2 live
    # f32 copies), so they are a fixed charge rather than a per-row one.
    temp_fixed = _CHUNK_ROWS * dim * 8
    tm_chunked = (tile_budget - temp_fixed) // io_per_row
    tm_whole = tile_budget // (io_per_row + dim * 8)   # small-tile (no chunking) case
    tm = max(tm_chunked, tm_whole, sub)
    tm = min(tm, _MAX_BLOCK_ROWS, rows)
    tm = max(sub, (tm // sub) * sub)

    # Split a single-step workload only when the chip has 2 TensorCores (v7x);
    # on single-TC v5e/v6e the grid is sequential and splitting is pure loss.
    if num_tc >= 2 and tm >= rows and rows >= 2 * sub:
        tm = _round_up(pl.cdiv(rows, 2), sub)

    # Prefer a tile that divides rows, but only if it barely shrinks the tile:
    # one sublane-masked last block beats dropping every block below the
    # ~512-row roofline knee.
    if rows % tm != 0:
        for t in range(tm - sub, sub - 1, -sub):
            if rows % t == 0:
                if 4 * t >= 3 * tm or t >= 512:
                    tm = t
                break

    # v7x: with a small grid, prefer an even step count so both TensorCores get
    # the same number of blocks ("parallel" axis is sharded across TCs).
    if num_tc >= 2:
        steps = pl.cdiv(rows, tm)
        if 1 < steps < 8 and steps % 2 == 1:
            tm_even = max(sub, _round_up(pl.cdiv(rows, steps + 1), sub))
            if pl.cdiv(rows, tm_even) % 2 == 0:
                tm = tm_even

    tm = min(tm, rows)
    chunk = min(_CHUNK_ROWS, tm)
    return tm, chunk


@partial(jax.jit, static_argnames=("eps", "mode", "tm", "chunk_rows", "vmem_limit"))
def _llama_rmsnorm_2d(x2, scale2, *, eps, mode, tm, chunk_rows, vmem_limit):
    rows, dim = x2.shape
    in_item = x2.dtype.itemsize
    grid = (pl.cdiv(rows, tm),)

    # TODO(synk): if dim < 128 in production, repack rows into lanes to avoid
    # lane-masked partial stores; Llama dims (4096/8192) are already lane-dense.
    cost = pl.CostEstimate(
        flops=3 * rows * dim,
        transcendentals=rows,
        bytes_accessed=rows * dim * 2 * in_item + dim * scale2.dtype.itemsize,
    )

    return pl.pallas_call(
        partial(_rmsnorm_kernel, eps=eps, chunk_rows=chunk_rows, mode=mode),
        out_shape=jax.ShapeDtypeStruct((rows, dim), x2.dtype),
        grid_spec=pltpu.PrefetchScalarGridSpec(
            num_scalar_prefetch=0,
            grid=grid,
            in_specs=[
                pl.BlockSpec((tm, dim), lambda i: (i, 0)),
                pl.BlockSpec((1, dim), lambda i: (0, 0)),
            ],
            out_specs=pl.BlockSpec((tm, dim), lambda i: (i, 0)),
        ),
        compiler_params=pltpu.CompilerParams(
            dimension_semantics=("parallel",),
            vmem_limit_bytes=vmem_limit,
        ),
        cost_estimate=cost,
    )(x2, scale2)


def llama_rmsnorm(x, scale, eps=1e-6):
    """x: (..., dim), scale: (dim,). Returns RMSNorm(x), shape/dtype of x."""
    # TODO(synk): PyTorch's `self.scale * x.to(input_dtype)` type-promotes to the
    # weight dtype (f32 weight + bf16 activations -> f32 output); here the output
    # stays in x.dtype as a documented parity choice.
    orig_shape = x.shape
    dim = orig_shape[-1]
    rows = math.prod(orig_shape[:-1]) if len(orig_shape) > 1 else 1
    x2 = x.reshape(rows, dim)

    tile_budget, vmem_limit, num_tc, has_bf16_vpu = _chip_profile()
    in_item = x2.dtype.itemsize
    tm, chunk_rows = _pick_tile(rows, dim, in_item, in_item, tile_budget, num_tc)

    if x.dtype == jnp.float32:
        mode = "f32"
        scale2 = scale.astype(jnp.float32).reshape(1, dim)
    elif has_bf16_vpu:
        # Pre-cast the weight once here; the in-kernel multiply runs packed and
        # the per-element cast round-trip disappears (<= 1 ulp vs f32-weight HF
        # rounding; exact for a low-precision-weight deployment).
        mode = "bf16_fast"
        scale2 = scale.astype(x.dtype).reshape(1, dim)
    else:
        # v5e has no bf16 VALU: keep explicit f32 math + cast round-trip.
        mode = "roundtrip"
        scale2 = scale.astype(jnp.float32).reshape(1, dim)

    out = _llama_rmsnorm_2d(
        x2, scale2,
        eps=float(eps), mode=mode, tm=int(tm),
        chunk_rows=int(chunk_rows), vmem_limit=int(vmem_limit),
    )
    return out.reshape(orig_shape)


if __name__ == "__main__":
    key = jax.random.PRNGKey(0)
    eps = 1e-6

    def ref_rmsnorm(x, scale, eps):
        xf = x.astype(jnp.float32)
        var = jnp.mean(xf * xf, axis=-1, keepdims=True)
        xn = (xf * jax.lax.rsqrt(var + eps)).astype(x.dtype)
        return (scale.astype(jnp.float32) * xn.astype(jnp.float32)).astype(x.dtype)

    # Primary small test matching the module spec: batch=2, seq=8, hidden=32 (f32).
    batch, seq, hidden = 2, 8, 32
    k0, k1 = jax.random.split(key)
    x = jax.random.normal(k0, (batch, seq, hidden), dtype=jnp.float32)
    scale = jnp.ones((hidden,), dtype=jnp.float32)
    out = jax.block_until_ready(llama_rmsnorm(x, scale, eps=eps))
    assert out.shape == x.shape and out.dtype == x.dtype
    assert jnp.allclose(out, ref_rmsnorm(x, scale, eps), atol=1e-5, rtol=1e-5)

    # Larger f32 slab: exercises the in-kernel chunked compute path (and the
    # masked last block / 2-step grid on v7x).
    x2 = jax.random.normal(k1, (1000, 256), dtype=jnp.float32)
    s2 = 1.0 + 0.01 * jnp.arange(256, dtype=jnp.float32)
    o2 = jax.block_until_ready(llama_rmsnorm(x2, s2, eps=eps))
    assert jnp.allclose(o2, ref_rmsnorm(x2, s2, eps), atol=1e-4, rtol=1e-4)

    # bf16 activations (fast path on chips with a bf16 VPU).
    xb = jax.random.normal(k0, (4, 8, 128), dtype=jnp.bfloat16)
    sb = jnp.ones((128,), dtype=jnp.float32)
    ob = jax.block_until_ready(llama_rmsnorm(xb, sb, eps=eps))
    assert ob.shape == xb.shape and ob.dtype == xb.dtype
    assert jnp.allclose(ob.astype(jnp.float32),
                        ref_rmsnorm(xb, sb, eps).astype(jnp.float32),
                        atol=2e-2, rtol=2e-2)

    print("KERNEL_OK")
</pallas_src>

<mosaic_0001>
module attributes {stable_mosaic.version = 11 : i64} {
  func.func @_rmsnorm_kernel(%arg0: i32, %arg1: memref<16x32xf32, #tpu.memory_space<vmem>>, %arg2: memref<1x32xf32, #tpu.memory_space<vmem>>, %arg3: memref<16x32xf32, #tpu.memory_space<vmem>>) attributes {dimension_semantics = [#tpu.dimension_semantics<parallel>], iteration_bounds = array<i64: 1>, scalar_prefetch = 0 : i64, scratch_operands = 0 : i64, tpu.core_type = #tpu.core_type<tc>, window_params = [{transform_indices = @transform_0, window_bounds = array<i64: 16, 32>}, {pipeline_mode = #tpu.pipeline_mode<synchronous>, transform_indices = @transform_1, window_bounds = array<i64: 1, 32>}, {transform_indices = @transform_2, window_bounds = array<i64: 16, 32>}]} {
    %c0 = arith.constant 0 : index
    %c0_0 = arith.constant 0 : index
    %0 = vector.load %arg1[%c0, %c0_0] : memref<16x32xf32, #tpu.memory_space<vmem>>, vector<16x32xf32>
    %1 = arith.mulf %0, %0 : vector<16x32xf32>
    %cst = arith.constant dense<0.000000e+00> : vector<16xf32>
    %2 = vector.multi_reduction <add>, %1, %cst [1] : vector<16x32xf32> to vector<16xf32>
    %3 = vector.shape_cast %2 : vector<16xf32> to vector<16x1xf32>
    %cst_1 = arith.constant 3.200000e+01 : f32
    %4 = vector.broadcast %cst_1 : f32 to vector<16x1xf32>
    %5 = arith.divf %3, %4 : vector<16x1xf32>
    %cst_2 = arith.constant 9.99999997E-7 : f32
    %6 = vector.broadcast %cst_2 : f32 to vector<16x1xf32>
    %7 = arith.addf %5, %6 : vector<16x1xf32>
    %8 = math.rsqrt %7 : vector<16x1xf32>
    %9 = vector.broadcast %8 : vector<16x1xf32> to vector<16x32xf32>
    %10 = arith.mulf %0, %9 : vector<16x32xf32>
    %c0_3 = arith.constant 0 : index
    %c0_4 = arith.constant 0 : index
    %11 = vector.load %arg2[%c0_3, %c0_4] : memref<1x32xf32, #tpu.memory_space<vmem>>, vector<1x32xf32>
    %12 = vector.broadcast %11 : vector<1x32xf32> to vector<16x32xf32>
    %13 = arith.mulf %12, %10 : vector<16x32xf32>
    %c0_5 = arith.constant 0 : index
    %c0_6 = arith.constant 0 : index
    %14 = vector.load %arg3[%c0_5, %c0_6] : memref<16x32xf32, #tpu.memory_space<vmem>>, vector<16x32xf32>
    tpu.vector_store %arg3[%c0_5, %c0_6], %13 {strides = array<i32>} : memref<16x32xf32, #tpu.memory_space<vmem>>, vector<16x32xf32>,
    return
  }
  func.func @transform_0(%arg0: i32) -> (i32, i32) {
    %c0_i32 = arith.constant 0 : i32
    %c0_i32_0 = arith.constant 0 : i32
    return %arg0, %c0_i32 : i32, i32
  }
  func.func @transform_1(%arg0: i32) -> (i32, i32) {
    %c0_i32 = arith.constant 0 : i32
    %c0_i32_0 = arith.constant 0 : i32
    %c0_i32_1 = arith.constant 0 : i32
    return %c0_i32, %c0_i32_0 : i32, i32
  }
  func.func @transform_2(%arg0: i32) -> (i32, i32) {
    %c0_i32 = arith.constant 0 : i32
    %c0_i32_0 = arith.constant 0 : i32
    return %arg0, %c0_i32 : i32, i32
  }
}

</mosaic_0001>

<llo_original>
// kernel: _llama_rmsnorm_2d.1
$region0: #{_llama_rmsnorm_2d.1}
  #allocation0 [shape = 'u32[]', space=smem, size = 0x4, offset = 0x4, fixed_abs, tag = 'smem constant byte address 0x4 - core index']
  #allocation1 [shape = 'u32[144,128]{1,0:T(1,128)}', space=vmem, size = 0x12000, scoped, tag = 'internal scratch']
  %s0 = inlined_call_operand.hbm [shape: f32[16,32], index: 0, kind: input, shape index: {}]
  %s1 = inlined_call_operand.hbm [shape: f32[1,32], index: 1, kind: input, shape index: {}]
  %s2 = inlined_call_operand.hbm [shape: f32[16,32], index: 2, kind: output, shape index: {}]
  %s3 = sld [smem:[#allocation0]]
  $region26: #{_llama_rmsnorm_2d.1} parent=0
    _
  %s5 = ssub.s32 1, %s3
  %s6 = scalar_select 0, %s5, %s3
  $region1: #{_llama_rmsnorm_2d.1} parent=0
    #allocation2 [shape = 'u8[8192]{0}', space=vmem, size = 0x2000, scoped, tag = 'input window, operand 0, single buffered']
    #allocation3 [shape = 's32[1]{0}', space=sflag, size = 0x4, scoped, tag = 'scoped memory for _llama_rmsnorm_2d.1']
    #allocation4 [shape = 's32[1]{0}', space=sflag, size = 0x4, scoped, tag = 'scoped memory for _llama_rmsnorm_2d.1']
    #allocation5 [shape = 'u8[512]{0}', space=vmem, size = 0x400, scoped, tag = 'input window, operand 1, single buffered']
    #allocation6 [shape = 's32[1]{0}', space=sflag, size = 0x4, scoped, tag = 'scoped memory for _llama_rmsnorm_2d.1']
    #allocation7 [shape = 'u8[8192]{0}', space=vmem, size = 0x2000, scoped, tag = 'output window, operand 0, single buffered']
    %7 = vsyncpa [#allocation3], 0
    %8 = vsyncpa [#allocation6], 0
    %9 = vsyncpa [#allocation4], 0
    // Predicated region
    $region2: #{_llama_rmsnorm_2d.1} parent=1 // pred_check
      _
    $region3: #{_llama_rmsnorm_2d.1} parent=1 // pred_check_branch
      %11 = sbr.rel (0) target = $region5
    $region4: #{_llama_rmsnorm_2d.1} parent=1 // pred_region
      %s13 = ssub.s32 256, 256
      %14 = vsyncadd [#allocation3], %s13
      %s15 = sshll.u32 [#allocation2], 4
      %s16 = int_to_ptr.vmem [resolvable:$true] %s15
      %21 = dma.hbm_to_vmem [thread:$0]  %s0, 256, %s16, [#allocation3], 128, 128, 8
    $region5: #{_llama_rmsnorm_2d.1} parent=1 // pred_fallthru
      _
    // Predicated region
    $region6: #{_llama_rmsnorm_2d.1} parent=1 // pred_check
      _
    $region7: #{_llama_rmsnorm_2d.1} parent=1 // pred_check_branch
      %23 = sbr.rel (0) target = $region9
    $region8: #{_llama_rmsnorm_2d.1} parent=1 // pred_region
      %s25 = ssub.s32 16, 16
      %26 = vsyncadd [#allocation6], %s25
      %s28 = sshll.u32 [#allocation5], 4
      %s29 = int_to_ptr.vmem [resolvable:$true] %s28
      %31 = dma.hbm_to_vmem [thread:$0]  %s1, 16, %s29, [#allocation6]
    $region9: #{_llama_rmsnorm_2d.1} parent=1 // pred_fallthru
      _
    // Predicated region
    $region10: #{_llama_rmsnorm_2d.1} parent=1 // pred_check
      _
    $region11: #{_llama_rmsnorm_2d.1} parent=1 // pred_check_branch
      %33 = sbr.rel (0) target = $region13
    $region12: #{_llama_rmsnorm_2d.1} parent=1 // pred_region
      %34 = dma.done [#allocation3], 256
    $region13: #{_llama_rmsnorm_2d.1} parent=1 // pred_fallthru
      _
    // Predicated region
    $region14: #{_llama_rmsnorm_2d.1} parent=1 // pred_check
      _
    $region15: #{_llama_rmsnorm_2d.1} parent=1 // pred_check_branch
      %36 = sbr.rel (0) target = $region17
    $region16: #{_llama_rmsnorm_2d.1} parent=1 // pred_region
      %37 = dma.done [#allocation6], 16
    $region17: #{_llama_rmsnorm_2d.1} parent=1 // pred_fallthru
      _
    %v38 = vld [vmem:[#allocation2] sm:$0xff]
    %v39 = vld [vmem:[#allocation2 + $0x8] sm:$0xff]
    %v40 = vmul.f32 %v38, %v38
    %v41 = vmul.f32 %v39, %v39
    %vm42 = vcmask 261120
    %v43 = vsel %vm42, %v40, 0.0
    %44 = vadd.xlane.f32.xlu0 %v43
    %v45 = vpop.xlane.xlu0 %44
    %v46 = vsel %vm42, %v41, 0.0
    %47 = vadd.xlane.f32.xlu0 %v46
    %v48 = vpop.xlane.xlu0 %47
    %v49 = vrcp.pop 32.0
    %v50 = vmul.f32 %v45, %v49
    %v51 = vmul.f32 %v48, %v49
    %v52 = vadd.f32 %v50, 1e-06
    %v53 = vadd.f32 %v51, 1e-06
    %v54 = vrsqrt.pop %v52
    %v55 = vrsqrt.pop %v53
    %v56 = vmul.f32 %v38, %v54
    %v57 = vmul.f32 %v39, %v55
    %v58 = vld [vmem:[#allocation5] sm:$0x1]
    %v60 = vlaneseq
    %v61 = vshrl.u32 %v60, 7
    %v62 = vsub.s32 0, %v61
    %v63 = vrot.slane %v58, %v62
    %v65 = vmul.f32 %v63, %v56
    %v66 = vmul.f32 %v63, %v57
    %67 = vst.msk [vmem:[#allocation7] sm:$0xff] %vm42, %v65
    %68 = vst.msk [vmem:[#allocation7 + $0x8] sm:$0xff] %vm42, %v66
    // Predicated region
    $region18: #{_llama_rmsnorm_2d.1} parent=1 // pred_check
      _
    $region19: #{_llama_rmsnorm_2d.1} parent=1 // pred_check_branch
      %70 = sbr.rel (0) target = $region21
    $region20: #{_llama_rmsnorm_2d.1} parent=1 // pred_region
      %s72 = ssub.s32 256, 256
      %73 = vsyncadd [#allocation4], %s72
      %s74 = sshll.u32 [#allocation7], 4
      %s75 = int_to_ptr.vmem [resolvable:$true] %s74
      %80 = dma.vmem_to_hbm [thread:$0]  %s75, 256, %s2, [#allocation4], 128, 128, 8
    $region21: #{_llama_rmsnorm_2d.1} parent=1 // pred_fallthru
      _
    // Predicated region
    $region22: #{_llama_rmsnorm_2d.1} parent=1 // pred_check
      _
    $region23: #{_llama_rmsnorm_2d.1} parent=1 // pred_check_branch
      %82 = sbr.rel (0) target = $region25
    $region24: #{_llama_rmsnorm_2d.1} parent=1 // pred_region
      %83 = dma.done [#allocation4], 256
    $region25: #{_llama_rmsnorm_2d.1} parent=1 // pred_fallthru
      _
    %84 = vsyncpa [#allocation3], 1
    %85 = vsyncpa [#allocation6], 1
    %86 = vsyncpa [#allocation4], 1

</llo_original>
